<compile_context>
chip_gen: v7x
topology: tpu7x:2x2x1
jax: 0.10.0
libtpu: 0.0.40
codegen_flags: <defaults>
</compile_context>

<pallas_src>
import functools
from typing import Any, NamedTuple, Tuple

import jax
import jax.numpy as jnp
from jax.experimental import pallas as pl
from jax.experimental.pallas import tpu as pltpu


def _round_up(x, m):
    return ((x + m - 1) // m) * m


def _pad_cols(x, width):
    """Zero-pad the last axis of a 2-D array up to `width` (exact for this MLP:
    the matching extra W1 rows are zero)."""
    if x.shape[-1] == width:
        return x
    return jnp.pad(x, ((0, 0), (0, width - x.shape[-1])))


def _num_tensorcores():
    """Best-effort TensorCore count (2 on v7x, 1 on v5e/v6e).  Falls back to 1
    (conservative: no grid split) if the query is unavailable."""
    try:
        info_fn = getattr(pltpu, "get_tpu_info", None)
        if info_fn is not None:
            info = info_fn()
            for name in ("num_tensor_cores", "tensor_core_count", "num_cores"):
                v = getattr(info, name, None)
                if v:
                    return int(v)
    except Exception:
        pass
    return 1


def _pick_tile_m(n_rows, n_layers, c_pad, f_pad, in_itemsize, out_itemsize,
                 vmem_budget_bytes, num_cores):
    """Row-tile size.

    Large enough to amortize the ~0.35us/grid-step pipeline overhead and fill
    the MXU M dimension (cap 2048), small enough that the double-buffered
    x/out tiles stay inside `vmem_budget_bytes` (default ~10 MiB, which fits
    v5e's 16 MiB scoped-VMEM default; v6e/v7x's 32 MiB defaults have more
    headroom).  The >=2-total-grid-steps split is only applied on
    2-TensorCore parts (v7x); on v5e/v6e it would just halve MXU M-fill and
    double per-step overhead for zero parallelism.
    """
    per_row_bytes = c_pad * in_itemsize + f_pad * out_itemsize   # x-row + out-row
    cap = min(2048, vmem_budget_bytes // (2 * per_row_bytes))    # double-buffered
    if n_layers < 2 and num_cores >= 2:
        want = _round_up(pl.cdiv(n_rows, 2), 8)   # keep >=2 steps for 2 TCs
    else:
        want = n_rows                             # one full-extent tile if it fits
    if want <= cap:
        return max(1, want)
    return max(8, (cap // 8) * 8)                 # multiple-of-8 tiles, partial tail


# ----------------------------------------------------------------------------
# Pallas kernel: y = relu(x @ W1 + b1) @ W2 + b2, optionally L2-normalized
# ----------------------------------------------------------------------------
def _mlp_head_kernel(x_ref, w1_ref, b1_ref, w2_ref, b2_ref, o_ref, *, normalize):
    x = x_ref[...]                               # (TM, C)   f32 or bf16
    w1 = w1_ref[...]                             # (C, F)
    w2 = w2_ref[...]                             # (F, F)
    b1 = b1_ref[...].astype(jnp.float32)         # (1, F)
    b2 = b2_ref[...].astype(jnp.float32)         # (1, F)

    h = jnp.dot(x, w1, preferred_element_type=jnp.float32) + b1          # MXU
    h = jnp.maximum(h, 0.0)                                               # VPU
    y = jnp.dot(h.astype(w2.dtype), w2,
                preferred_element_type=jnp.float32) + b2                  # MXU

    if normalize:
        # Normalize(power=2): y / (sqrt(sum_f y^2) + 1e-7).
        denom = jnp.sqrt(jnp.sum(y * y, axis=-1, keepdims=True)) + 1e-7   # XLU
        inv = pl.reciprocal(denom, approx=True)                           # EUP
        inv = inv * (2.0 - denom * inv)   # one Newton step -> ~f32-exact (VALU)
        y = y * inv
    o_ref[...] = y.astype(o_ref.dtype)


def mlp_head_stacked(x, w1, b1, w2, b2, *, normalize=True,
                     out_dtype=jnp.float32, tile_m=None, num_cores=None,
                     vmem_budget_bytes=10 * 1024 * 1024):
    """Fused MLP head over stacked layers.

    x : (L, N, C_pad) sampled rows (channel axis already padded/cast)
    w1: (L, C_pad, F_pad)   b1: (L, 1, F_pad)
    w2: (L, F_pad, F_pad)   b2: (L, 1, F_pad)
    Returns (L, N, F_pad) in out_dtype (caller slices back to n_features).
    """
    n_layers, n_rows, c_in = x.shape
    f_pad = w1.shape[-1]

    if num_cores is None:
        num_cores = _num_tensorcores()
    if tile_m is None:
        tile_m = _pick_tile_m(n_rows, n_layers, c_in, f_pad,
                              jnp.dtype(x.dtype).itemsize,
                              jnp.dtype(out_dtype).itemsize,
                              vmem_budget_bytes, num_cores)
    n_tiles = pl.cdiv(n_rows, tile_m)            # no host-side row padding

    kernel = functools.partial(_mlp_head_kernel, normalize=normalize)
    # NOTE (load-bearing): grid order = (layer outer, row-tile inner) and the
    # weight index_maps are constant in `i`.  Consecutive inner steps revisit
    # the same weight block, so Pallas skips the W1/W2 re-DMA and the weights
    # stay VMEM-resident across the whole row loop of each layer.  Do NOT
    # reorder the grid or make the weight maps depend on `i`.
    return pl.pallas_call(
        kernel,
        out_shape=jax.ShapeDtypeStruct((n_layers, n_rows, f_pad), out_dtype),
        grid_spec=pltpu.PrefetchScalarGridSpec(
            num_scalar_prefetch=0,
            grid=(n_layers, n_tiles),
            in_specs=[
                pl.BlockSpec((None, tile_m, c_in), lambda l, i: (l, i, 0)),
                pl.BlockSpec((None, c_in, f_pad), lambda l, i: (l, 0, 0)),
                pl.BlockSpec((None, 1, f_pad), lambda l, i: (l, 0, 0)),
                pl.BlockSpec((None, f_pad, f_pad), lambda l, i: (l, 0, 0)),
                pl.BlockSpec((None, 1, f_pad), lambda l, i: (l, 0, 0)),
            ],
            out_specs=pl.BlockSpec((None, tile_m, f_pad),
                                   lambda l, i: (l, i, 0)),
        ),
        compiler_params=pltpu.CompilerParams(
            dimension_semantics=("parallel", "parallel")),
    )(x, w1, b1, w2, b2)


# ----------------------------------------------------------------------------
# One-time parameter preparation (hoisted out of the forward pass)
# ----------------------------------------------------------------------------
class PreparedParams(NamedTuple):
    w1: jax.Array          # (L, C_pad, F_pad)  compute dtype
    b1: jax.Array          # (L, 1, F_pad)      f32
    w2: jax.Array          # (L, F_pad, F_pad)  compute dtype
    b2: jax.Array          # (L, 1, F_pad)      f32
    c_sizes: Tuple[int, ...]
    c_pad: int
    f_pad: int
    n_feat: int
    compute_dtype: Any


def prepare_params(params, *, compute_dtype=jnp.bfloat16):
    """Stack per-layer MLP weights, zero-pad C/F to lane-dense widths and cast
    to the kernel I/O dtype.  Done ONCE so every forward call skips the
    pad/stack XLA ops and the redundant weight HBM traffic."""
    n_layers = len(params)
    n_feat = params[0][0].shape[1]
    c_sizes = tuple(w1.shape[0] for (w1, _, _, _) in params)
    c_max = max(c_sizes)
    # Lane-dense K axis for the first matmul when C is big enough to matter;
    # for tiny C the 128/C HBM inflation outweighs the unmasked-load win.
    c_pad = _round_up(c_max, 128) if c_max > 64 else c_max
    f_pad = _round_up(n_feat, 128)

    w1 = jnp.stack([jnp.pad(w1, ((0, c_pad - w1.shape[0]), (0, f_pad - n_feat)))
                    for (w1, _, _, _) in params]).astype(compute_dtype)
    b1 = jnp.stack([jnp.pad(b1, (0, f_pad - n_feat))
                    for (_, b1, _, _) in params]
                   ).reshape(n_layers, 1, f_pad).astype(jnp.float32)
    w2 = jnp.stack([jnp.pad(w2, ((0, f_pad - n_feat), (0, f_pad - n_feat)))
                    for (_, _, w2, _) in params]).astype(compute_dtype)
    b2 = jnp.stack([jnp.pad(b2, (0, f_pad - n_feat))
                    for (_, _, _, b2) in params]
                   ).reshape(n_layers, 1, f_pad).astype(jnp.float32)
    return PreparedParams(w1, b1, w2, b2, c_sizes, c_pad, f_pad, n_feat,
                          compute_dtype)


def init_params(nce_layer_channels, n_features, key):
    """Per-layer MLP params (PyTorch-Linear-style uniform init)."""
    params = []
    for ch_in in nce_layer_channels:
        key, k1, k2, k3, k4 = jax.random.split(key, 5)
        bound1 = 1.0 / jnp.sqrt(ch_in)
        bound2 = 1.0 / jnp.sqrt(n_features)
        w1 = jax.random.uniform(k1, (ch_in, n_features), jnp.float32,
                                -bound1, bound1)
        b1 = jax.random.uniform(k2, (n_features,), jnp.float32, -bound1, bound1)
        w2 = jax.random.uniform(k3, (n_features, n_features), jnp.float32,
                                -bound2, bound2)
        b2 = jax.random.uniform(k4, (n_features,), jnp.float32, -bound2, bound2)
        params.append((w1, b1, w2, b2))
    return params


# ----------------------------------------------------------------------------
# EncoderFeatureExtractor forward (patch sampling, layer fusion, NCHW restore)
# ----------------------------------------------------------------------------
def encoder_feature_extractor_forward(feats, prepared, num_patches,
                                      patch_ids=None, sample_key=None):
    """Mirrors EncoderFeatureExtractor.forward.

    feats    : list of (B, C_l, H_l, W_l) NCHW feature maps (one per NCE layer)
    prepared : PreparedParams from prepare_params()
    """
    n_feat = prepared.n_feat
    cdt = prepared.compute_dtype
    return_ids = []
    return_feats = []

    if num_patches > 0:
        xs = []
        for feat_id, feat in enumerate(feats):
            b, c, h, w = feat.shape
            hw = h * w
            flat = feat.reshape(b, c, hw)            # NO full-map transpose
            if patch_ids is not None:
                patch_id = patch_ids[feat_id]
            else:
                # TODO(synk): module uses a global numpy RNG; jax.random here.
                sample_key, sub = jax.random.split(sample_key)
                patch_id = jax.random.permutation(sub, hw)
                if num_patches < hw:
                    patch_id = patch_id[:num_patches]
            return_ids.append(patch_id)
            # Gather the sampled columns FIRST, then transpose only the tiny
            # (B, C, P) block: touches B*C*P elements instead of the whole map.
            g = jnp.take(flat, patch_id, axis=2)     # (B, C, P)
            xs.append(jnp.transpose(g, (0, 2, 1)).reshape(-1, c))   # (B*P, C_l)

        if len({x.shape[0] for x in xs}) == 1:
            # One fused pallas_call for all layers (same row count): pad the
            # channel axis to the shared width with zeros (exact) and cast to
            # the kernel I/O dtype (bf16 halves HBM traffic; f32 accumulate).
            x_all = jnp.stack([_pad_cols(x, prepared.c_pad) for x in xs]
                              ).astype(cdt)
            out_all = mlp_head_stacked(x_all, prepared.w1, prepared.b1,
                                       prepared.w2, prepared.b2,
                                       normalize=True, out_dtype=jnp.float32)
            out_all = out_all[..., :n_feat]
            return_feats = [out_all[l] for l in range(len(feats))]
        else:
            # Different row counts per layer (num_patches >= H*W somewhere).
            for l, x in enumerate(xs):
                xl = _pad_cols(x, prepared.c_pad).astype(cdt)[None]
                yl = mlp_head_stacked(
                    xl, prepared.w1[l:l + 1], prepared.b1[l:l + 1],
                    prepared.w2[l:l + 1], prepared.b2[l:l + 1],
                    normalize=True, out_dtype=jnp.float32)
                return_feats.append(yl[0, :, :n_feat])
    else:
        for l, feat in enumerate(feats):
            b, c, h, w = feat.shape
            # All H*W rows go through the MLP here, so the full transpose is
            # proportional to the kernel work (unavoidable and cheap relative).
            fr = jnp.transpose(feat.reshape(b, c, h * w), (0, 2, 1))  # (B,HW,C)
            x = _pad_cols(fr.reshape(-1, c), prepared.c_pad).astype(cdt)[None]
            y = mlp_head_stacked(
                x, prepared.w1[l:l + 1], prepared.b1[l:l + 1],
                prepared.w2[l:l + 1], prepared.b2[l:l + 1],
                normalize=False, out_dtype=jnp.float32)
            y = y[0, :, :n_feat].reshape(b, h * w, n_feat)
            # PyTorch Normalize(2) on the 3-D tensor sums over dim 1 (= H*W),
            # NOT the feature dim — reproduce that exactly (cross-row-tile
            # reduction, so it stays in XLA glue).
            norm = jnp.sqrt(jnp.sum(y * y, axis=1, keepdims=True))
            y = y / (norm + 1e-7)
            y = jnp.transpose(y, (0, 2, 1)).reshape(b, n_feat, h, w)
            return_ids.append(jnp.asarray([], dtype=jnp.int32))
            return_feats.append(y)
    return return_feats, return_ids


# ----------------------------------------------------------------------------
# Pure-JAX references for sanity checking
# ----------------------------------------------------------------------------
def _ref_mlp(x, w1, b1, w2, b2):
    h = jnp.maximum(x @ w1 + b1, 0.0)
    return h @ w2 + b2


def _ref_normalize(y, axis):
    norm = jnp.sqrt(jnp.sum(y * y, axis=axis, keepdims=True))
    return y / (norm + 1e-7)


if __name__ == "__main__":
    key = jax.random.PRNGKey(0)
    k_feat0, k_feat1, k_params, k_sample, k_x = jax.random.split(key, 5)

    nce_layer_channels = [4, 8]
    n_features = 32
    num_patches = 8
    batch = 2

    feats = [
        jax.random.normal(k_feat0, (batch, 4, 16, 16), jnp.float32),
        jax.random.normal(k_feat1, (batch, 8, 8, 8), jnp.float32),
    ]
    params = init_params(nce_layer_channels, n_features, k_params)
    prepared_f32 = prepare_params(params, compute_dtype=jnp.float32)
    prepared_bf16 = prepare_params(params, compute_dtype=jnp.bfloat16)

    ok = True
    tol_f32 = dict(atol=5e-3, rtol=5e-3)
    tol_bf16 = dict(atol=4e-2, rtol=4e-2)   # bf16 inputs/weights, f32 accumulate

    # ---- Path A: num_patches > 0, f32 I/O (single fused kernel, 2 layers) ----
    out_feats, out_ids = encoder_feature_extractor_forward(
        feats, prepared_f32, num_patches, patch_ids=None, sample_key=k_sample)
    jax.block_until_ready(out_feats)
    refs_a = []
    for feat, (w1, b1, w2, b2), pid, got in zip(feats, params, out_ids,
                                                out_feats):
        b, c, h, w = feat.shape
        fr = jnp.transpose(feat.reshape(b, c, h * w), (0, 2, 1))
        x = fr[:, pid, :].reshape(-1, c)
        ref = _ref_normalize(_ref_mlp(x, w1, b1, w2, b2), axis=-1)
        refs_a.append(ref)
        ok = ok and (got.shape == (b * num_patches, n_features))
        ok = ok and bool(jnp.allclose(got, ref, **tol_f32))

    # ---- Path A again, bf16 I/O (same patch ids), looser tolerance ----
    out_feats_bf, _ = encoder_feature_extractor_forward(
        feats, prepared_bf16, num_patches, patch_ids=out_ids)
    jax.block_until_ready(out_feats_bf)
    for got, ref in zip(out_feats_bf, refs_a):
        ok = ok and bool(jnp.allclose(got.astype(jnp.float32), ref, **tol_bf16))

    # ---- Path B: num_patches == 0, f32 I/O (per-layer, NCHW output restore) --
    out_feats0, _ = encoder_feature_extractor_forward(feats, prepared_f32, 0)
    jax.block_until_ready(out_feats0)
    for feat, (w1, b1, w2, b2), got in zip(feats, params, out_feats0):
        b, c, h, w = feat.shape
        fr = jnp.transpose(feat.reshape(b, c, h * w), (0, 2, 1))
        y = _ref_mlp(fr.reshape(-1, c), w1, b1, w2, b2)
        y = _ref_normalize(y.reshape(b, h * w, n_features), axis=1)
        ref = jnp.transpose(y, (0, 2, 1)).reshape(b, n_features, h, w)
        ok = ok and (got.shape == (b, n_features, h, w))
        ok = ok and bool(jnp.allclose(got, ref, **tol_f32))

    # ---- Partial last row-tile (no host-side pad): n not a tile multiple ----
    w1, b1, w2, b2 = params[0]
    x_odd = jax.random.normal(k_x, (20, nce_layer_channels[0]), jnp.float32)
    x_odd_p = _pad_cols(x_odd, prepared_f32.c_pad)[None]
    got = mlp_head_stacked(x_odd_p, prepared_f32.w1[0:1], prepared_f32.b1[0:1],
                           prepared_f32.w2[0:1], prepared_f32.b2[0:1],
                           normalize=True, tile_m=16)[0, :, :n_features]
    jax.block_until_ready(got)
    ref = _ref_normalize(_ref_mlp(x_odd, w1, b1, w2, b2), axis=-1)
    ok = ok and bool(jnp.allclose(got, ref, **tol_f32))

    print("KERNEL_OK" if ok else "MISMATCH")
</pallas_src>

<mosaic_0001>
module attributes {stable_mosaic.version = 11 : i64} {
  func.func @_mlp_head_kernel(%arg0: i32, %arg1: i32, %arg2: memref<1x16x8xf32, #tpu.memory_space<vmem>>, %arg3: memref<1x8x128xf32, #tpu.memory_space<vmem>>, %arg4: memref<1x1x128xf32, #tpu.memory_space<vmem>>, %arg5: memref<1x128x128xf32, #tpu.memory_space<vmem>>, %arg6: memref<1x1x128xf32, #tpu.memory_space<vmem>>, %arg7: memref<1x16x128xf32, #tpu.memory_space<vmem>>) attributes {dimension_semantics = [#tpu.dimension_semantics<parallel>, #tpu.dimension_semantics<parallel>], iteration_bounds = array<i64: 2, 1>, scalar_prefetch = 0 : i64, scratch_operands = 0 : i64, tpu.core_type = #tpu.core_type<tc>, window_params = [{transform_indices = @transform_0, window_bounds = array<i64: 1, 16, 8>}, {transform_indices = @transform_1, window_bounds = array<i64: 1, 8, 128>}, {transform_indices = @transform_2, window_bounds = array<i64: 1, 1, 128>}, {transform_indices = @transform_3, window_bounds = array<i64: 1, 128, 128>}, {transform_indices = @transform_4, window_bounds = array<i64: 1, 1, 128>}, {transform_indices = @transform_5, window_bounds = array<i64: 1, 16, 128>}]} {
    %c0 = arith.constant 0 : index
    %c0_0 = arith.constant 0 : index
    %c0_1 = arith.constant 0 : index
    %0 = vector.load %arg2[%c0, %c0_0, %c0_1] : memref<1x16x8xf32, #tpu.memory_space<vmem>>, vector<1x16x8xf32>
    %1 = vector.shape_cast %0 : vector<1x16x8xf32> to vector<16x8xf32>
    %c0_2 = arith.constant 0 : index
    %c0_3 = arith.constant 0 : index
    %c0_4 = arith.constant 0 : index
    %2 = vector.load %arg3[%c0_2, %c0_3, %c0_4] : memref<1x8x128xf32, #tpu.memory_space<vmem>>, vector<1x8x128xf32>
    %3 = vector.shape_cast %2 : vector<1x8x128xf32> to vector<8x128xf32>
    %c0_5 = arith.constant 0 : index
    %c0_6 = arith.constant 0 : index
    %c0_7 = arith.constant 0 : index
    %4 = vector.load %arg5[%c0_5, %c0_6, %c0_7] : memref<1x128x128xf32, #tpu.memory_space<vmem>>, vector<1x128x128xf32>
    %5 = vector.shape_cast %4 : vector<1x128x128xf32> to vector<128x128xf32>
    %c0_8 = arith.constant 0 : index
    %c0_9 = arith.constant 0 : index
    %c0_10 = arith.constant 0 : index
    %6 = vector.load %arg4[%c0_8, %c0_9, %c0_10] : memref<1x1x128xf32, #tpu.memory_space<vmem>>, vector<1x1x128xf32>
    %7 = vector.shape_cast %6 : vector<1x1x128xf32> to vector<1x128xf32>
    %c0_11 = arith.constant 0 : index
    %c0_12 = arith.constant 0 : index
    %c0_13 = arith.constant 0 : index
    %8 = vector.load %arg6[%c0_11, %c0_12, %c0_13] : memref<1x1x128xf32, #tpu.memory_space<vmem>>, vector<1x1x128xf32>
    %9 = vector.shape_cast %8 : vector<1x1x128xf32> to vector<1x128xf32>
    %cst = arith.constant dense<0.000000e+00> : vector<16x128xf32>
    %10 = tpu.matmul %1, %3, %cst {dimension_numbers = #tpu.dot_dimension_numbers<[1], [0], [0], [1], [0, 0, 1, 1], [], []>} : vector<16x8xf32>, vector<8x128xf32>, vector<16x128xf32> -> vector<16x128xf32>
    %11 = vector.broadcast %7 : vector<1x128xf32> to vector<16x128xf32>
    %12 = arith.addf %10, %11 : vector<16x128xf32>
    %cst_14 = arith.constant 0.000000e+00 : f32
    %13 = vector.broadcast %cst_14 : f32 to vector<16x128xf32>
    %14 = arith.maximumf %12, %13 : vector<16x128xf32>
    %cst_15 = arith.constant dense<0.000000e+00> : vector<16x128xf32>
    %15 = tpu.matmul %14, %5, %cst_15 {dimension_numbers = #tpu.dot_dimension_numbers<[1], [0], [0], [1], [0, 0, 1, 1], [], []>} : vector<16x128xf32>, vector<128x128xf32>, vector<16x128xf32> -> vector<16x128xf32>
    %16 = vector.broadcast %9 : vector<1x128xf32> to vector<16x128xf32>
    %17 = arith.addf %15, %16 : vector<16x128xf32>
    %18 = arith.mulf %17, %17 : vector<16x128xf32>
    %cst_16 = arith.constant dense<0.000000e+00> : vector<16xf32>
    %19 = vector.multi_reduction <add>, %18, %cst_16 [1] : vector<16x128xf32> to vector<16xf32>
    %20 = vector.shape_cast %19 : vector<16xf32> to vector<16x1xf32>
    %21 = math.sqrt %20 : vector<16x1xf32>
    %cst_17 = arith.constant 1.000000e-07 : f32
    %22 = vector.broadcast %cst_17 : f32 to vector<16x1xf32>
    %23 = arith.addf %21, %22 : vector<16x1xf32>
    %24 = tpu.reciprocal %23 {approx = true} : vector<16x1xf32> -> vector<16x1xf32>
    %25 = arith.mulf %23, %24 : vector<16x1xf32>
    %cst_18 = arith.constant 2.000000e+00 : f32
    %26 = vector.broadcast %cst_18 : f32 to vector<16x1xf32>
    %27 = arith.subf %26, %25 : vector<16x1xf32>
    %28 = arith.mulf %24, %27 : vector<16x1xf32>
    %29 = vector.broadcast %28 : vector<16x1xf32> to vector<16x128xf32>
    %30 = arith.mulf %17, %29 : vector<16x128xf32>
    %c0_19 = arith.constant 0 : index
    %c0_20 = arith.constant 0 : index
    %c0_21 = arith.constant 0 : index
    %31 = vector.load %arg7[%c0_19, %c0_20, %c0_21] : memref<1x16x128xf32, #tpu.memory_space<vmem>>, vector<1x16x128xf32>
    %32 = vector.shape_cast %31 : vector<1x16x128xf32> to vector<16x128xf32>
    %33 = vector.shape_cast %30 : vector<16x128xf32> to vector<1x16x128xf32>
    tpu.vector_store %arg7[%c0_19, %c0_20, %c0_21], %33 {strides = array<i32>} : memref<1x16x128xf32, #tpu.memory_space<vmem>>, vector<1x16x128xf32>,
    return
  }
  func.func @transform_0(%arg0: i32, %arg1: i32) -> (i32, i32, i32) {
    %c0_i32 = arith.constant 0 : i32
    %c0_i32_0 = arith.constant 0 : i32
    return %arg0, %arg1, %c0_i32 : i32, i32, i32
  }
  func.func @transform_1(%arg0: i32, %arg1: i32) -> (i32, i32, i32) {
    %c0_i32 = arith.constant 0 : i32
    %c0_i32_0 = arith.constant 0 : i32
    %c0_i32_1 = arith.constant 0 : i32
    return %arg0, %c0_i32, %c0_i32_0 : i32, i32, i32
  }
  func.func @transform_2(%arg0: i32, %arg1: i32) -> (i32, i32, i32) {
    %c0_i32 = arith.constant 0 : i32
    %c0_i32_0 = arith.constant 0 : i32
    %c0_i32_1 = arith.constant 0 : i32
    return %arg0, %c0_i32, %c0_i32_0 : i32, i32, i32
  }
  func.func @transform_3(%arg0: i32, %arg1: i32) -> (i32, i32, i32) {
    %c0_i32 = arith.constant 0 : i32
    %c0_i32_0 = arith.constant 0 : i32
    %c0_i32_1 = arith.constant 0 : i32
    return %arg0, %c0_i32, %c0_i32_0 : i32, i32, i32
  }
  func.func @transform_4(%arg0: i32, %arg1: i32) -> (i32, i32, i32) {
    %c0_i32 = arith.constant 0 : i32
    %c0_i32_0 = arith.constant 0 : i32
    %c0_i32_1 = arith.constant 0 : i32
    return %arg0, %c0_i32, %c0_i32_0 : i32, i32, i32
  }
  func.func @transform_5(%arg0: i32, %arg1: i32) -> (i32, i32, i32) {
    %c0_i32 = arith.constant 0 : i32
    %c0_i32_0 = arith.constant 0 : i32
    return %arg0, %arg1, %c0_i32 : i32, i32, i32
  }
}

</mosaic_0001>

<llo_original>
// kernel: tpu_custom_call.1
$region0: #{tpu_custom_call.1}
  #allocation0 [shape = 'u32[]', space=smem, size = 0x4, offset = 0x4, fixed_abs, tag = 'smem constant byte address 0x4 - core index']
  #allocation1 [shape = 'u32[144,128]{1,0:T(1,128)}', space=vmem, size = 0x12000, scoped, tag = 'internal scratch']
  %s0 = inlined_call_operand.vmem [shape: f32[2,16,8], index: 0, kind: input, shape index: {}]
  %s1 = inlined_call_operand.vmem [shape: f32[2,8,128], index: 1, kind: input, shape index: {}]
  %s2 = inlined_call_operand.vmem [shape: f32[2,1,128], index: 2, kind: input, shape index: {}]
  %s3 = inlined_call_operand.hbm [shape: f32[2,128,128], index: 3, kind: input, shape index: {}]
  %s4 = inlined_call_operand.vmem [shape: f32[2,1,128], index: 4, kind: input, shape index: {}]
  %s5 = inlined_call_operand.hbm [shape: f32[2,16,128], index: 5, kind: output, shape index: {}]
  %s6 = sld [smem:[#allocation0]]
  $region57: #{tpu_custom_call.1} parent=0
    _
  %s8 = ssub.s32 1, %s6
  %s9 = scalar_select 0, %s8, %s6
  $region1: #{tpu_custom_call.1} parent=0
    #allocation2 [shape = 'u8[131072]{0}', space=vmem, size = 0x20000, scoped, tag = 'input window, operand 3']
    #allocation3 [shape = 's32[2]{0}', space=sflag, size = 0x8, scoped, tag = 'scoped memory for tpu_custom_call.1']
    #allocation4 [shape = 's32[2]{0}', space=sflag, size = 0x8, scoped, tag = 'scoped memory for tpu_custom_call.1']
    #allocation5 [shape = 'u8[16384]{0}', space=vmem, size = 0x4000, scoped, tag = 'output window, operand 0']
    %10 = vsyncpa [#allocation3], 0
    %s11 = scalar_lea.sflag [#allocation3], 1
    %12 = vsyncpa %s11, 0
    %13 = vsyncpa [#allocation4], 0
    %s14 = scalar_lea.sflag [#allocation4], 1
    %15 = vsyncpa %s14, 0
    loop: start=0, step=1, limit=4
    $region2: #{tpu_custom_call.1} parent=1 // loop_pre_header
      _
    $region3: #{tpu_custom_call.1} parent=1 // loop_header
      %s17 = sphi 0, %s21
      %p18 = scmp.ge.s32.totalorder %s17, 4
      %s24 = sphi 0, %s36
      %s25 = sphi 0, %s32
      %s26 = sphi 0, %s24
      %s27 = sphi 0, %s25
      %s28 = sphi 0, %s26
      %s29 = sphi 0, %s27
      %s41 = sphi 0, %s43
      %s44 = sphi 0, %s41
      %s45 = sphi 0, %s44
      %s61 = sphi 0, %s45
      %s67 = sphi 0, %s69
      %s70 = sphi 0, %s67
      %s71 = sphi 0, %s70
      %s87 = sphi 0, %s71
      %s93 = sphi 0, %s95
      %s96 = sphi 0, %s93
      %s97 = sphi 0, %s96
      %s113 = sphi 0, %s97
      %s119 = sphi 0, %s121
      %s122 = sphi 0, %s119
      %s123 = sphi 0, %s122
      %s139 = sphi 0, %s123
      %s145 = sphi 0, %s147
      %s148 = sphi 0, %s145
      %s149 = sphi 0, %s148
      %s165 = sphi 0, %s149
      %s173 = sphi 0, %s175
      %s176 = sphi 0, %s173
      %s177 = sphi 0, %s176
      %s193 = sphi 0, %s177
    $region4: #{tpu_custom_call.1} parent=1 // loop_header_branch
      %20 = sbr.rel (%p18) target = $region8
    $region5: #{tpu_custom_call.1} parent=1 // loop_body
      %s22 = ssub.s32 %s17, 1
      %s23 = ssub.s32 %s17, 2
      %s30 = sadd.s32 1, %s25
      %p31 = scmp.ge.s32.totalorder %s30, 1
      %s32 = scalar_select %p31, 0, %s30
      %s33 = sadd.s32 1, %s24
      %s34 = scalar_select %p31, %s33, %s24
      %p35 = scmp.ge.s32.totalorder %s34, 2
      %s36 = scalar_select %p35, 0, %s34
      %s37 = ssub.s32 %s24, %s36
      %s38 = ssub.s32 %s25, %s32
      %s39 = sor.u32 %s37, %s38
      %p40 = scmp.eq.s32.totalorder %s39, 0
      %s42 = sadd.s32 %s41, 1
      %s43 = scalar_select %p40, %s41, %s42
      %p46 = pneg %p40
      %p47 = scmp.eq.s32.totalorder %s17, 1
      %p48 = por %p46, %p47
      %p49 = scmp.ne.s32.totalorder %s41, %s44
      %p50 = scmp.eq.s32.totalorder %s17, 0
      %p51 = por %p49, %p50
      %p52 = scmp.ne.s32.totalorder %s41, %s44
      %p53 = scmp.eq.s32.totalorder %s22, 1
      %p54 = por %p52, %p53
      %p55 = scmp.ne.s32.totalorder %s44, %s45
      %p56 = scmp.eq.s32.totalorder %s22, 0
      %p57 = por %p55, %p56
      %p58 = scmp.ne.s32.totalorder %s44, %s45
      %p59 = scmp.eq.s32.totalorder %s23, 1
      %p60 = por %p58, %p59
      %p62 = scmp.ne.s32.totalorder %s45, %s61
      %p63 = scmp.eq.s32.totalorder %s23, 0
      %p64 = por %p62, %p63
      %s65 = ssub.s32 %s24, %s36
      %p66 = scmp.eq.s32.totalorder %s65, 0
      %s68 = sadd.s32 %s67, 1
      %s69 = scalar_select %p66, %s67, %s68
      %p72 = pneg %p66
      %p73 = scmp.eq.s32.totalorder %s17, 1
      %p74 = por %p72, %p73
      %p75 = scmp.ne.s32.totalorder %s67, %s70
      %p76 = scmp.eq.s32.totalorder %s17, 0
      %p77 = por %p75, %p76
      %p78 = scmp.ne.s32.totalorder %s67, %s70
      %p79 = scmp.eq.s32.totalorder %s22, 1
      %p80 = por %p78, %p79
      %p81 = scmp.ne.s32.totalorder %s70, %s71
      %p82 = scmp.eq.s32.totalorder %s22, 0
      %p83 = por %p81, %p82
      %p84 = scmp.ne.s32.totalorder %s70, %s71
      %p85 = scmp.eq.s32.totalorder %s23, 1
      %p86 = por %p84, %p85
      %p88 = scmp.ne.s32.totalorder %s71, %s87
      %p89 = scmp.eq.s32.totalorder %s23, 0
      %p90 = por %p88, %p89
      %s91 = ssub.s32 %s24, %s36
      %p92 = scmp.eq.s32.totalorder %s91, 0
      %s94 = sadd.s32 %s93, 1
      %s95 = scalar_select %p92, %s93, %s94
      %p98 = pneg %p92
      %p99 = scmp.eq.s32.totalorder %s17, 1
      %p100 = por %p98, %p99
      %p101 = scmp.ne.s32.totalorder %s93, %s96
      %p102 = scmp.eq.s32.totalorder %s17, 0
      %p103 = por %p101, %p102
      %p104 = scmp.ne.s32.totalorder %s93, %s96
      %p105 = scmp.eq.s32.totalorder %s22, 1
      %p106 = por %p104, %p105
      %p107 = scmp.ne.s32.totalorder %s96, %s97
      %p108 = scmp.eq.s32.totalorder %s22, 0
      %p109 = por %p107, %p108
      %p110 = scmp.ne.s32.totalorder %s96, %s97
      %p111 = scmp.eq.s32.totalorder %s23, 1
      %p112 = por %p110, %p111
      %p114 = scmp.ne.s32.totalorder %s97, %s113
      %p115 = scmp.eq.s32.totalorder %s23, 0
      %p116 = por %p114, %p115
      %s117 = ssub.s32 %s24, %s36
      %p118 = scmp.eq.s32.totalorder %s117, 0
      %s120 = sadd.s32 %s119, 1
      %s121 = scalar_select %p118, %s119, %s120
      %p124 = pneg %p118
      %p125 = scmp.eq.s32.totalorder %s17, 1
      %p126 = por %p124, %p125
      %p127 = scmp.ne.s32.totalorder %s119, %s122
      %p128 = scmp.eq.s32.totalorder %s17, 0
      %p129 = por %p127, %p128
      %p130 = scmp.ne.s32.totalorder %s119, %s122
      %p131 = scmp.eq.s32.totalorder %s22, 1
      %p132 = por %p130, %p131
      %p133 = scmp.ne.s32.totalorder %s122, %s123
      %p134 = scmp.eq.s32.totalorder %s22, 0
      %p135 = por %p133, %p134
      %p136 = scmp.ne.s32.totalorder %s122, %s123
      %p137 = scmp.eq.s32.totalorder %s23, 1
      %p138 = por %p136, %p137
      %p140 = scmp.ne.s32.totalorder %s123, %s139
      %p141 = scmp.eq.s32.totalorder %s23, 0
      %p142 = por %p140, %p141
      %s143 = ssub.s32 %s24, %s36
      %p144 = scmp.eq.s32.totalorder %s143, 0
      %s146 = sadd.s32 %s145, 1
      %s147 = scalar_select %p144, %s145, %s146
      %p150 = pneg %p144
      %p151 = scmp.eq.s32.totalorder %s17, 1
      %p152 = por %p150, %p151
      %p153 = scmp.ne.s32.totalorder %s145, %s148
      %p154 = scmp.eq.s32.totalorder %s17, 0
      %p155 = por %p153, %p154
      %p156 = scmp.ne.s32.totalorder %s145, %s148
      %p157 = scmp.eq.s32.totalorder %s22, 1
      %p158 = por %p156, %p157
      %p159 = scmp.ne.s32.totalorder %s148, %s149
      %p160 = scmp.eq.s32.totalorder %s22, 0
      %p161 = por %p159, %p160
      %p162 = scmp.ne.s32.totalorder %s148, %s149
      %p163 = scmp.eq.s32.totalorder %s23, 1
      %p164 = por %p162, %p163
      %p166 = scmp.ne.s32.totalorder %s149, %s165
      %p167 = scmp.eq.s32.totalorder %s23, 0
      %p168 = por %p166, %p167
      %s169 = ssub.s32 %s24, %s36
      %s170 = ssub.s32 %s25, %s32
      %s171 = sor.u32 %s169, %s170
      %p172 = scmp.eq.s32.totalorder %s171, 0
      %s174 = sadd.s32 %s173, 1
      %s175 = scalar_select %p172, %s173, %s174
      %p178 = pneg %p172
      %p179 = scmp.eq.s32.totalorder %s17, 1
      %p180 = por %p178, %p179
      %p181 = scmp.ne.s32.totalorder %s173, %s176
      %p182 = scmp.eq.s32.totalorder %s17, 0
      %p183 = por %p181, %p182
      %p184 = scmp.ne.s32.totalorder %s173, %s176
      %p185 = scmp.eq.s32.totalorder %s22, 1
      %p186 = por %p184, %p185
      %p187 = scmp.ne.s32.totalorder %s176, %s177
      %p188 = scmp.eq.s32.totalorder %s22, 0
      %p189 = por %p187, %p188
      %p190 = scmp.ne.s32.totalorder %s176, %s177
      %p191 = scmp.eq.s32.totalorder %s23, 1
      %p192 = por %p190, %p191
      %p194 = scmp.ne.s32.totalorder %s177, %s193
      %p195 = scmp.eq.s32.totalorder %s23, 0
      %p196 = por %p194, %p195
      %p197 = scmp.le.s32.totalorder 1, %s17
      %p198 = scmp.lt.s32.totalorder %s17, 3
      %p199 = pnand %p197, %p198
      %p200 = pneg %p199
      // Predicated region
      $region9: #{tpu_custom_call.1} parent=5 // pred_check
        _
      $region10: #{tpu_custom_call.1} parent=5 // pred_check_branch
        %202 = sbr.rel (%p199) target = $region12
      $region11: #{tpu_custom_call.1} parent=5 // pred_region
        %s203 = ssub.s32 %s17, 1
      $region12: #{tpu_custom_call.1} parent=5 // pred_fallthru
        _
      %p204 = scmp.lt.s32.totalorder %s17, 2
      // Predicated region
      $region13: #{tpu_custom_call.1} parent=5 // pred_check
        %p205 = pneg %p204
      $region14: #{tpu_custom_call.1} parent=5 // pred_check_branch
        %207 = sbr.rel (%p205) target = $region16
      $region15: #{tpu_custom_call.1} parent=5 // pred_region
        // Predicated region
        $region17: #{tpu_custom_call.1} parent=15 // pred_check
          %p208 = pneg %p51
        $region18: #{tpu_custom_call.1} parent=15 // pred_check_branch
          %210 = sbr.rel (%p208) target = $region20
        $region19: #{tpu_custom_call.1} parent=15 // pred_region
          %s211 = smul.u32 2, %s25
          %p212 = scmp.lt.s32.totalorder %s24, 1
          %s213 = scalar_select %p212, %s24, 1
          %p214 = scmp.lt.s32.totalorder %s211, 1
          %s215 = scalar_select %p214, %s211, 1
          %s216 = smul.addr %s213, 2
          %s217 = sadd.s32 %s215, %s216
          %s218 = smul.addr %s217, 8
          %s219 = scalar_lea.vmem %s0, %s218
          %s220 = smul.u32 2, %s25
        $region20: #{tpu_custom_call.1} parent=15 // pred_fallthru
          _
        // Predicated region
        $region21: #{tpu_custom_call.1} parent=15 // pred_check
          %p221 = pneg %p77
        $region22: #{tpu_custom_call.1} parent=15 // pred_check_branch
          %223 = sbr.rel (%p221) target = $region24
        $region23: #{tpu_custom_call.1} parent=15 // pred_region
          %p224 = scmp.lt.s32.totalorder %s24, 1
          %s225 = scalar_select %p224, %s24, 1
          %s226 = smul.addr %s225, 8
          %s227 = scalar_lea.vmem %s1, %s226
        $region24: #{tpu_custom_call.1} parent=15 // pred_fallthru
          _
        // Predicated region
        $region25: #{tpu_custom_call.1} parent=15 // pred_check
          %p228 = pneg %p103
        $region26: #{tpu_custom_call.1} parent=15 // pred_check_branch
          %230 = sbr.rel (%p228) target = $region28
        $region27: #{tpu_custom_call.1} parent=15 // pred_region
          %p231 = scmp.lt.s32.totalorder %s24, 1
          %s232 = scalar_select %p231, %s24, 1
          %s233 = scalar_lea.vmem %s2, %s232
        $region28: #{tpu_custom_call.1} parent=15 // pred_fallthru
          _
        // Predicated region
        $region29: #{tpu_custom_call.1} parent=15 // pred_check
          %p234 = pneg %p129
        $region30: #{tpu_custom_call.1} parent=15 // pred_check_branch
          %236 = sbr.rel (%p234) target = $region32
        $region31: #{tpu_custom_call.1} parent=15 // pred_region
          %s237 = sand.u32 %s119, 1
          %s238 = scalar_lea.sflag [#allocation3], %s237
          %s239 = sand.u32 %s119, 1
          %s240 = smul.addr %s239, 128
          %s241 = scalar_lea.vmem [#allocation2], %s240
          %s243 = ssub.s32 2048, 2048
          %244 = vsyncadd %s238, %s243
          %s245 = smul.addr %s24, 16
          %s246 = smul.addr %s245, 128
          %s247 = scalar_lea.hbm %s3, %s246
          %s248 = sshll.u32 %s241, 4
          %s249 = int_to_ptr.vmem [resolvable:$true] %s248
          %254 = dma.hbm_to_vmem [thread:$0]  %s247, 2048, %s249, %s238, 128, 128, 8
        $region32: #{tpu_custom_call.1} parent=15 // pred_fallthru
          _
        // Predicated region
        $region33: #{tpu_custom_call.1} parent=15 // pred_check
          %p255 = pneg %p155
        $region34: #{tpu_custom_call.1} parent=15 // pred_check_branch
          %257 = sbr.rel (%p255) target = $region36
        $region35: #{tpu_custom_call.1} parent=15 // pred_region
          %p258 = scmp.lt.s32.totalorder %s24, 1
          %s259 = scalar_select %p258, %s24, 1
          %s260 = scalar_lea.vmem %s4, %s259
        $region36: #{tpu_custom_call.1} parent=15 // pred_fallthru
          _
      $region16: #{tpu_custom_call.1} parent=5 // pred_fallthru
        _
      %p261 = scmp.le.s32.totalorder 1, %s17
      %p262 = scmp.lt.s32.totalorder %s17, 3
      %p263 = pnand %p261, %p262
      %p264 = pneg %p263
      // Predicated region
      $region37: #{tpu_custom_call.1} parent=5 // pred_check
        _
      $region38: #{tpu_custom_call.1} parent=5 // pred_check_branch
        %266 = sbr.rel (%p263) target = $region40
      $region39: #{tpu_custom_call.1} parent=5 // pred_region
        %s267 = ssub.s32 %s17, 1
        %s268 = sand.u32 %s122, 1
        %s269 = scalar_lea.sflag [#allocation3], %s268
        %s270 = sand.u32 %s122, 1
        %s271 = smul.addr %s270, 128
        %s272 = scalar_lea.vmem [#allocation2], %s271
        // Predicated region
        $region41: #{tpu_custom_call.1} parent=39 // pred_check
          %p273 = pneg %p135
        $region42: #{tpu_custom_call.1} parent=39 // pred_check_branch
          %275 = sbr.rel (%p273) target = $region44
        $region43: #{tpu_custom_call.1} parent=39 // pred_region
          %276 = dma.done %s269, 2048
        $region44: #{tpu_custom_call.1} parent=39 // pred_fallthru
          _
        %s277 = smul.u32 2, %s27
        %p278 = scmp.lt.s32.totalorder %s26, 1
        %s279 = scalar_select %p278, %s26, 1
        %p280 = scmp.lt.s32.totalorder %s277, 1
        %s281 = scalar_select %p280, %s277, 1
        %s282 = smul.addr %s279, 2
        %s283 = sadd.s32 %s281, %s282
        %s284 = smul.addr %s283, 8
        %s285 = scalar_lea.vmem %s0, %s284
        %p286 = pneg %p57
        %p287 = pneg %p54
        %p288 = scmp.lt.s32.totalorder %s26, 1
        %s289 = scalar_select %p288, %s26, 1
        %s290 = smul.addr %s289, 8
        %s291 = scalar_lea.vmem %s1, %s290
        %p292 = pneg %p83
        %p293 = pneg %p80
        %p294 = scmp.lt.s32.totalorder %s26, 1
        %s295 = scalar_select %p294, %s26, 1
        %s296 = scalar_lea.vmem %s2, %s295
        %p297 = pneg %p109
        %p298 = pneg %p106
        %s299 = sand.u32 %s122, 1
        %s300 = scalar_lea.sflag [#allocation3], %s299
        %s301 = sand.u32 %s122, 1
        %s302 = smul.addr %s301, 128
        %s303 = scalar_lea.vmem [#allocation2], %s302
        %p304 = pneg %p135
        %p305 = pneg %p132
        %p306 = scmp.lt.s32.totalorder %s26, 1
        %s307 = scalar_select %p306, %s26, 1
        %s308 = scalar_lea.vmem %s4, %s307
        %p309 = pneg %p161
        %p310 = pneg %p158
        %p311 = pneg %p189
        %p312 = pneg %p186
        %s313 = sand.u32 %s176, 1
        %s314 = scalar_lea.sflag [#allocation4], %s313
        %s315 = sand.u32 %s176, 1
        %s316 = smul.addr %s315, 16
        %s317 = scalar_lea.vmem [#allocation5], %s316
        %s318 = smul.u32 2, %s27
        %p319 = scmp.lt.s32.totalorder %s26, 1
        %s320 = scalar_select %p319, %s26, 1
        %p321 = scmp.lt.s32.totalorder %s318, 1
        %s322 = scalar_select %p321, %s318, 1
        %s323 = smul.addr %s320, 2
        %s324 = sadd.s32 %s322, %s323
        %s325 = smul.addr %s324, 8
        %s326 = scalar_lea.vmem %s0, %s325
        %s327 = smul.u32 2, %s27
        %p328 = scmp.lt.s32.totalorder %s26, 1
        %s329 = scalar_select %p328, %s26, 1
        %s330 = smul.addr %s329, 8
        %s331 = scalar_lea.vmem %s1, %s330
        %p332 = scmp.lt.s32.totalorder %s26, 1
        %s333 = scalar_select %p332, %s26, 1
        %s334 = scalar_lea.vmem %s2, %s333
        %p335 = scmp.lt.s32.totalorder %s26, 1
        %s336 = scalar_select %p335, %s26, 1
        %s337 = scalar_lea.vmem %s4, %s336
        %s338 = smul.u32 2, %s27
        %v339 = vld [vmem:[%s326] sm:$0xff]
        %v340 = vld [vmem:[%s326 + $0x8] sm:$0xff]
        %v341 = vld [vmem:[%s331] sm:$0xff]
        %v342 = vld [vmem:[%s272] sm:$0xff]
        %v343 = vld [vmem:[%s272 + $0x8] sm:$0xff]
        %v344 = vld [vmem:[%s272 + $0x10] sm:$0xff]
        %v345 = vld [vmem:[%s272 + $0x18] sm:$0xff]
        %v346 = vld [vmem:[%s272 + $0x20] sm:$0xff]
        %v347 = vld [vmem:[%s272 + $0x28] sm:$0xff]
        %v348 = vld [vmem:[%s272 + $0x30] sm:$0xff]
        %v349 = vld [vmem:[%s272 + $0x38] sm:$0xff]
        %v350 = vld [vmem:[%s272 + $0x40] sm:$0xff]
        %v351 = vld [vmem:[%s272 + $0x48] sm:$0xff]
        %v352 = vld [vmem:[%s272 + $0x50] sm:$0xff]
        %v353 = vld [vmem:[%s272 + $0x58] sm:$0xff]
        %v354 = vld [vmem:[%s272 + $0x60] sm:$0xff]
        %v355 = vld [vmem:[%s272 + $0x68] sm:$0xff]
        %v356 = vld [vmem:[%s272 + $0x70] sm:$0xff]
        %v357 = vld [vmem:[%s272 + $0x78] sm:$0xff]
        %v358 = vld [vmem:[%s334] sm:$0x1]
        %v359 = vld [vmem:[%s337] sm:$0x1]
        %v361 = vlaneseq
        %v362 = vshrl.u32 %v361, 7
        %v363 = vsub.s32 0, %v362
        %v364 = vrot.slane %v358, %v363
        %vm366 = vcmask 64512
        %v368 = vsel %vm366, %v339, 0
        %v371 = vsel %vm366, %v340, 0
        %373 = vmatprep.subr.mxu0 0.0
        %374 = vmatpush1.msra.mxu0 %v341
        %375 = vmatprep.subr.mxu0 0.0
        %376 = vmatpush1.msra.mxu0 0.0
        %377 = vmatprep.subr.mxu0 0.0
        %378 = vmatpush1.msra.mxu0 0.0
        %379 = vmatprep.subr.mxu0 0.0
        %380 = vmatpush1.msra.mxu0 0.0
        %381 = vmatprep.subr.mxu0 0.0
        %382 = vmatpush1.msra.mxu0 0.0
        %383 = vmatprep.subr.mxu0 0.0
        %384 = vmatpush1.msra.mxu0 0.0
        %385 = vmatprep.subr.mxu0 0.0
        %386 = vmatpush1.msra.mxu0 0.0
        %387 = vmatprep.subr.mxu0 0.0
        %388 = vmatpush1.msra.mxu0 0.0
        %389 = vmatprep.subr.mxu0 0.0
        %390 = vmatpush1.msra.mxu0 0.0
        %391 = vmatprep.subr.mxu0 0.0
        %392 = vmatpush1.msra.mxu0 0.0
        %393 = vmatprep.subr.mxu0 0.0
        %394 = vmatpush1.msra.mxu0 0.0
        %395 = vmatprep.subr.mxu0 0.0
        %396 = vmatpush1.msra.mxu0 0.0
        %397 = vmatprep.subr.mxu0 0.0
        %398 = vmatpush1.msra.mxu0 0.0
        %399 = vmatprep.subr.mxu0 0.0
        %400 = vmatpush1.msra.mxu0 0.0
        %401 = vmatprep.subr.mxu0 0.0
        %402 = vmatpush1.msra.mxu0 0.0
        %403 = vmatprep.subr.mxu0 0.0
        %404 = vmatpush1.msra.mxu0 0.0
        %405 = vmatprep.subr.mxu0 0.0
        %406 = vmatpush1.msra.mxu0 0.0
        %407 = vmatprep.subr.mxu0 0.0
        %408 = vmatpush1.msra.mxu0 0.0
        %409 = vmatprep.subr.mxu0 0.0
        %410 = vmatpush1.msra.mxu0 0.0
        %411 = vmatprep.subr.mxu0 0.0
        %412 = vmatpush1.msra.mxu0 0.0
        %413 = vmatprep.subr.mxu0 0.0
        %414 = vmatpush1.msra.mxu0 0.0
        %415 = vmatprep.subr.mxu0 0.0
        %416 = vmatpush1.msra.mxu0 0.0
        %417 = vmatprep.subr.mxu0 0.0
        %418 = vmatpush1.msra.mxu0 0.0
        %419 = vmatprep.subr.mxu0 0.0
        %420 = vmatpush1.msra.mxu0 0.0
        %421 = vmatprep.subr.mxu0 0.0
        %422 = vmatpush1.msra.mxu0 0.0
        %423 = vmatprep.subr.mxu0 0.0
        %424 = vmatpush1.msra.mxu0 0.0
        %425 = vmatprep.subr.mxu0 0.0
        %426 = vmatpush1.msra.mxu0 0.0
        %427 = vmatprep.subr.mxu0 0.0
        %428 = vmatpush1.msra.mxu0 0.0
        %429 = vmatprep.subr.mxu0 0.0
        %430 = vmatpush1.msra.mxu0 0.0
        %431 = vmatprep.subr.mxu0 0.0
        %432 = vmatpush1.msra.mxu0 0.0
        %433 = vmatprep.subr.mxu0 0.0
        %434 = vmatpush1.msra.mxu0 0.0
        %435 = vmatprep.subr.mxu0 0.0
        %436 = vmatpush1.msra.mxu0 0.0
        %437 = vmatprep.mubr.f32.mxu0 0.0
        %438 = vmatmul.mubr.f32.gmra.mrb[0].mxu0 %v368
        %v439 = vpop.f32.mrb[0].mxu0
        %v440 = vadd.f32 %v364, %v439
        %v441 = vpop.f32.mrb[0].mxu0
        %442 = vmatprep.mubr.f32.mxu0 0.0
        %443 = vmatmul.mubr.f32.gmra.mrb[0].mxu0 %v371
        %v444 = vpop.f32.mrb[0].mxu0
        %v445 = vadd.f32 %v364, %v444
        %v446 = vpop.f32.mrb[0].mxu0
        %447 = vdwg.mxu0
        %v448 = vmax.f32 %v440, 0.0
        %v449 = vmax.f32 %v445, 0.0
        %v451 = vlaneseq
        %v452 = vshrl.u32 %v451, 7
        %v453 = vsub.s32 0, %v452
        %v454 = vrot.slane %v359, %v453
        %456 = vmatprep.subr.mxu0 0.0
        %457 = vmatpush1.msra.mxu0 %v342
        %458 = vmatprep.subr.mxu0 0.0
        %459 = vmatpush1.msra.mxu0 %v343
        %460 = vmatprep.subr.mxu0 0.0
        %461 = vmatpush1.msra.mxu0 %v344
        %462 = vmatprep.subr.mxu0 0.0
        %463 = vmatpush1.msra.mxu0 %v345
        %464 = vmatprep.subr.mxu0 0.0
        %465 = vmatpush1.msra.mxu0 %v346
        %466 = vmatprep.subr.mxu0 0.0
        %467 = vmatpush1.msra.mxu0 %v347
        %468 = vmatprep.subr.mxu0 0.0
        %469 = vmatpush1.msra.mxu0 %v348
        %470 = vmatprep.subr.mxu0 0.0
        %471 = vmatpush1.msra.mxu0 %v349
        %472 = vmatprep.subr.mxu0 0.0
        %473 = vmatpush1.msra.mxu0 %v350
        %474 = vmatprep.subr.mxu0 0.0
        %475 = vmatpush1.msra.mxu0 %v351
        %476 = vmatprep.subr.mxu0 0.0
        %477 = vmatpush1.msra.mxu0 %v352
        %478 = vmatprep.subr.mxu0 0.0
        %479 = vmatpush1.msra.mxu0 %v353
        %480 = vmatprep.subr.mxu0 0.0
        %481 = vmatpush1.msra.mxu0 %v354
        %482 = vmatprep.subr.mxu0 0.0
        %483 = vmatpush1.msra.mxu0 %v355
        %484 = vmatprep.subr.mxu0 0.0
        %485 = vmatpush1.msra.mxu0 %v356
        %486 = vmatprep.subr.mxu0 0.0
        %487 = vmatpush1.msra.mxu0 %v357
        %488 = vmatprep.subr.mxu0 0.0
        %489 = vmatpush1.msra.mxu0 0.0
        %490 = vmatprep.subr.mxu0 0.0
        %491 = vmatpush1.msra.mxu0 0.0
        %492 = vmatprep.subr.mxu0 0.0
        %493 = vmatpush1.msra.mxu0 0.0
        %494 = vmatprep.subr.mxu0 0.0
        %495 = vmatpush1.msra.mxu0 0.0
        %496 = vmatprep.subr.mxu0 0.0
        %497 = vmatpush1.msra.mxu0 0.0
        %498 = vmatprep.subr.mxu0 0.0
        %499 = vmatpush1.msra.mxu0 0.0
        %500 = vmatprep.subr.mxu0 0.0
        %501 = vmatpush1.msra.mxu0 0.0
        %502 = vmatprep.subr.mxu0 0.0
        %503 = vmatpush1.msra.mxu0 0.0
        %504 = vmatprep.subr.mxu0 0.0
        %505 = vmatpush1.msra.mxu0 0.0
        %506 = vmatprep.subr.mxu0 0.0
        %507 = vmatpush1.msra.mxu0 0.0
        %508 = vmatprep.subr.mxu0 0.0
        %509 = vmatpush1.msra.mxu0 0.0
        %510 = vmatprep.subr.mxu0 0.0
        %511 = vmatpush1.msra.mxu0 0.0
        %512 = vmatprep.subr.mxu0 0.0
        %513 = vmatpush1.msra.mxu0 0.0
        %514 = vmatprep.subr.mxu0 0.0
        %515 = vmatpush1.msra.mxu0 0.0
        %516 = vmatprep.subr.mxu0 0.0
        %517 = vmatpush1.msra.mxu0 0.0
        %518 = vmatprep.subr.mxu0 0.0
        %519 = vmatpush1.msra.mxu0 0.0
        %520 = vmatprep.mubr.f32.mxu0 0.0
        %521 = vmatmul.mubr.f32.gmra.mrb[0].mxu0 %v448
        %v522 = vpop.f32.mrb[0].mxu0
        %v523 = vadd.f32 %v454, %v522
        %v524 = vpop.f32.mrb[0].mxu0
        %525 = vmatprep.mubr.f32.mxu0 0.0
        %526 = vmatmul.mubr.f32.gmra.mrb[0].mxu0 %v449
        %v527 = vpop.f32.mrb[0].mxu0
        %v528 = vadd.f32 %v454, %v527
        %v529 = vpop.f32.mrb[0].mxu0
        %530 = vdwg.mxu0
        %v531 = vmul.f32 %v523, %v523
        %v532 = vmul.f32 %v528, %v528
        %533 = vadd.xlane.f32.xlu0 %v531
        %v534 = vpop.xlane.xlu0 %533
        %535 = vadd.xlane.f32.xlu0 %v532
        %v536 = vpop.xlane.xlu0 %535
        %v537 = vrsqrt.pop %v534
        %v538 = vmul.f32 %v534, %v537
        %vm539 = vcmp.eq.f32.partialorder %v534, inf
        %v540 = vsel %vm539, %v534, %v538
        %vm541 = vcmp.eq.f32.partialorder %v534, 0.0
        %v542 = vand.u32 %v534, 2147483648
        %v543 = vsel %vm541, %v542, %v540
        %v544 = vrsqrt.pop %v536
        %v545 = vmul.f32 %v536, %v544
        %vm546 = vcmp.eq.f32.partialorder %v536, inf
        %v547 = vsel %vm546, %v536, %v545
        %vm548 = vcmp.eq.f32.partialorder %v536, 0.0
        %v549 = vand.u32 %v536, 2147483648
        %v550 = vsel %vm548, %v549, %v547
        %v551 = vadd.f32 %v543, 1e-07
        %v552 = vadd.f32 %v550, 1e-07
        %v553 = vrcp.pop %v551
        %v554 = vrcp.pop %v552
        %v555 = vmul.f32 %v551, %v553
        %v556 = vmul.f32 %v552, %v554
        %v557 = vsub.f32 2.0, %v555
        %v558 = vsub.f32 2.0, %v556
        %v559 = vmul.f32 %v553, %v557
        %v560 = vmul.f32 %v554, %v558
        %v561 = vmul.f32 %v523, %v559
        %v562 = vmul.f32 %v528, %v560
        %563 = vst [vmem:[%s317] sm:$0xff] %v561
        %564 = vst [vmem:[%s317 + $0x8] sm:$0xff] %v562
        %s565 = sand.u32 %s176, 1
        %s566 = scalar_lea.sflag [#allocation4], %s565
        %s567 = sand.u32 %s176, 1
        %s568 = smul.addr %s567, 16
        %s569 = scalar_lea.vmem [#allocation5], %s568
        // Predicated region
        $region45: #{tpu_custom_call.1} parent=39 // pred_check
          %p570 = pneg %p186
        $region46: #{tpu_custom_call.1} parent=39 // pred_check_branch
          %572 = sbr.rel (%p570) target = $region48
        $region47: #{tpu_custom_call.1} parent=39 // pred_region
          %s573 = smul.u32 2, %s27
          %s575 = ssub.s32 256, 256
          %576 = vsyncadd %s566, %s575
          %s577 = smul.addr %s26, 2
          %s578 = sadd.s32 %s573, %s577
          %s579 = smul.addr %s578, 128
          %s580 = scalar_lea.hbm %s5, %s579
          %s581 = sshll.u32 %s569, 4
          %s582 = int_to_ptr.vmem [resolvable:$true] %s581
          %587 = dma.vmem_to_hbm [thread:$0]  %s582, 256, %s580, %s566, 128, 128, 8
        $region48: #{tpu_custom_call.1} parent=39 // pred_fallthru
          _
      $region40: #{tpu_custom_call.1} parent=5 // pred_fallthru
        _
      %p588 = scmp.le.s32.totalorder 2, %s17
      // Predicated region
      $region49: #{tpu_custom_call.1} parent=5 // pred_check
        %p589 = pneg %p588
      $region50: #{tpu_custom_call.1} parent=5 // pred_check_branch
        %591 = sbr.rel (%p589) target = $region52
      $region51: #{tpu_custom_call.1} parent=5 // pred_region
        %s592 = ssub.s32 %s17, 2
        // Predicated region
        $region53: #{tpu_custom_call.1} parent=51 // pred_check
          %p593 = pneg %p192
        $region54: #{tpu_custom_call.1} parent=51 // pred_check_branch
          %595 = sbr.rel (%p593) target = $region56
        $region55: #{tpu_custom_call.1} parent=51 // pred_region
          %s596 = sand.u32 %s177, 1
          %s597 = scalar_lea.sflag [#allocation4], %s596
          %s598 = sand.u32 %s177, 1
          %s599 = smul.addr %s598, 16
          %s600 = scalar_lea.vmem [#allocation5], %s599
          %601 = dma.done %s597, 256
        $region56: #{tpu_custom_call.1} parent=51 // pred_fallthru
          _
      $region52: #{tpu_custom_call.1} parent=5 // pred_fallthru
        _
    $region6: #{tpu_custom_call.1} parent=1 // loop_footer
      %s21 = sadd.s32 1, %s17
    $region7: #{tpu_custom_call.1} parent=1 // loop_footer_branch
      %16 = sbr.rel target = $region3
    $region8: #{tpu_custom_call.1} parent=1 // loop_exit
      _
    %602 = vsyncpa [#allocation3], 1
    %s603 = scalar_lea.sflag [#allocation3], 1
    %604 = vsyncpa %s603, 1
    %605 = vsyncpa [#allocation4], 1
    %s606 = scalar_lea.sflag [#allocation4], 1
    %607 = vsyncpa %s606, 1

</llo_original>
